<compile_context>
chip_gen: v7x
topology: tpu7x:2x2x1
jax: 0.10.0
libtpu: 0.0.40
codegen_flags: <defaults>
</compile_context>

<pallas_src>
import functools
import math

import jax
import jax.numpy as jnp
from jax import lax
from jax.experimental import pallas as pl
from jax.experimental.pallas import tpu as pltpu

B_J0 = 0.2          # b_j0
BETA_ADAPT = 1.8    # beta for isAdapt=1
BN_EPS = 1e-5
HP = lax.Precision.HIGHEST


def _vspec():
    return pl.BlockSpec(memory_space=pltpu.MemorySpace.VMEM)


# ---------------------------------------------------------------------------
# One-time probe of pltpu.roll's sign convention (jnp.roll-like: out[i] = x[i - shift]).
# Resolved at trace time so the conv-tap / pool-window shift directions are always correct.
# ---------------------------------------------------------------------------
@functools.lru_cache(maxsize=None)
def _roll_is_numpy_convention():
    def k(x_ref, o_ref):
        o_ref[...] = pltpu.roll(x_ref[...], shift=1, axis=0)
    x = jnp.arange(16 * 128, dtype=jnp.float32).reshape(16, 128)
    y = pl.pallas_call(k, out_shape=jax.ShapeDtypeStruct((16, 128), jnp.float32),
                       in_specs=[_vspec()], out_specs=_vspec())(x)
    return bool(jnp.array_equal(y, jnp.roll(x, 1, axis=0)))


# ---------------------------------------------------------------------------
# In-kernel math helpers (traced inside the Pallas kernels)
# ---------------------------------------------------------------------------
def _mm(a, b):
    return jnp.dot(a, b, precision=HP, preferred_element_type=jnp.float32)


def _shift_rows(v, off):
    """result[r] = v[(r + off) % R] via one XLU sublane rotate (no concat / VMEM copies).
    Wrapped rows are always masked (conv edge masks) or never selected (pool gather)."""
    R = v.shape[0]
    off = off % R
    if off == 0:
        return v
    shift = (R - off) if _roll_is_numpy_convention() else off
    return pltpu.roll(v, shift=shift, axis=0)


def _batchnorm(x, gamma, beta):
    # training-mode BatchNorm2d over rows=(N,H,W) per lane=channel; single pass
    # (sum & sum-of-squares) instead of mean-then-centered-variance.
    inv_r = 1.0 / x.shape[0]
    mean = jnp.sum(x, axis=0, keepdims=True) * inv_r
    var = jnp.sum(x * x, axis=0, keepdims=True) * inv_r - mean * mean
    return (x - mean) * lax.rsqrt(var + BN_EPS) * gamma + beta


def _mem_update_adp(inputs, mem, spike, tau_adp, tau_m, b):
    b_new = tau_adp * b + (1.0 - tau_adp) * spike
    Bth = B_J0 + BETA_ADAPT * b_new
    mem_new = mem + (inputs - mem) * tau_m
    spk_new = (mem_new - Bth > 0).astype(jnp.float32)     # ActFun_adp forward
    mem_new = (1.0 - spk_new) * mem_new
    return mem_new, spk_new, b_new


def _edge_masks(R, C, H, W):
    """Boundary predicates for a 3x3 / pad-1 conv, built in-kernel from iota (no HBM masks)."""
    row = lax.broadcasted_iota(jnp.int32, (R, C), 0)
    x = row % W
    y = (row // W) % H
    return (y > 0, y < H - 1, x > 0, x < W - 1)


def _conv3x3(v, masks, w9, bias, W):
    """3x3, stride 1, pad 1 on the flattened (n, y, x) row grid: the 9 shifted + edge-masked
    taps are lane-concatenated into one (R, 9*Cin) operand, so the whole conv is a single
    MXU matmul against the tap-major (9*Cin, Cout) weight."""
    y_m, y_p, x_m, x_p = masks
    taps = []
    for dy in (-1, 0, 1):
        for dx in (-1, 0, 1):
            t = _shift_rows(v, dy * W + dx)
            if dy == -1:
                t = jnp.where(y_m, t, 0.0)
            elif dy == 1:
                t = jnp.where(y_p, t, 0.0)
            if dx == -1:
                t = jnp.where(x_m, t, 0.0)
            elif dx == 1:
                t = jnp.where(x_p, t, 0.0)
            taps.append(t)
    return _mm(jnp.concatenate(taps, axis=-1), w9) + bias


def _maxpool2x2(x, N, H, W, Ho, Wo):
    """nn.MaxPool2d(2,2) (floor): window max at every row via 3 sublane rolls, then one
    selection matmul (0/1 matrix built from iota) gathers rows (n, 2*yo, 2*xo) in output
    order.  No scratch buffer, no strided readback, no per-row slice+concat gather.
    TODO(synk): at full scale the (R_out, R_in) selection matrix is too large; switch to a
                row-tiled strided gather once the grid is tiled."""
    R_in = x.shape[0]
    R_out = N * Ho * Wo
    m = jnp.maximum(jnp.maximum(x, _shift_rows(x, 1)),
                    jnp.maximum(_shift_rows(x, W), _shift_rows(x, W + 1)))
    o_idx = lax.broadcasted_iota(jnp.int32, (R_out, R_in), 0)
    r_idx = lax.broadcasted_iota(jnp.int32, (R_out, R_in), 1)
    n = o_idx // (Ho * Wo)
    rem = o_idx - n * (Ho * Wo)
    yo = rem // Wo
    xo = rem - yo * Wo
    src = n * (H * W) + (2 * yo) * W + 2 * xo
    sel = (r_idx == src).astype(jnp.float32)
    return _mm(sel, m)


# ---------------------------------------------------------------------------
# Fused SNN_Conv_cell kernel:
#   conv_x + BN1 + maxpool(2,2) + conv_tauM/BN2/sigmoid + conv_tauAdp/BN3/sigmoid + LIF
# ---------------------------------------------------------------------------
def conv_cell_kernel(x_ref, mem_ref, spk_ref, badp_ref,
                     wx_ref, bx_ref, g1_ref, be1_ref,
                     wm_ref, bm_ref, g2_ref, be2_ref,
                     wa_ref, ba_ref, g3_ref, be3_ref,
                     mem_o_ref, spk_o_ref, b_o_ref,
                     *, N, H, W, Ho, Wo):
    cin = x_ref.shape[-1]
    cout = mem_ref.shape[-1]
    R_in = N * H * W
    R_out = N * Ho * Wo

    masks_in = _edge_masks(R_in, cin, H, W)
    masks_out = _edge_masks(R_out, cout, Ho, Wo)

    # conv_x + BN1 (batch statistics over all N*H*W rows) + 2x2/2 max pool
    conv_x = _batchnorm(_conv3x3(x_ref[...], masks_in, wx_ref[...], bx_ref[...], W),
                        g1_ref[...], be1_ref[...])
    pooled = _maxpool2x2(conv_x, N, H, W, Ho, Wo)

    # tauM / tauAdp convs (+BN+sigmoid) and the adaptive-LIF neuron update
    mem = mem_ref[...]
    badp = badp_ref[...]
    tau_m = jax.nn.sigmoid(_batchnorm(
        _conv3x3(pooled + mem, masks_out, wm_ref[...], bm_ref[...], Wo),
        g2_ref[...], be2_ref[...]))
    tau_a = jax.nn.sigmoid(_batchnorm(
        _conv3x3(pooled + badp, masks_out, wa_ref[...], ba_ref[...], Wo),
        g3_ref[...], be3_ref[...]))
    mem1, spk1, b1 = _mem_update_adp(pooled, mem, spk_ref[...], tau_a, tau_m, badp)

    # all state reads above; writes last (inputs 1..3 alias outputs 0..2)
    mem_o_ref[...] = mem1
    spk_o_ref[...] = spk1
    b_o_ref[...] = b1


# ---------------------------------------------------------------------------
# Fused dense tail kernel: snn1 + snn2 (SNN_rec_cell, is_rec=False) + readout
# (tauM / tauAdp use the module's original concatenated (2*nh, nh) weights: one matmul each)
# ---------------------------------------------------------------------------
def dense_tail_kernel(x_ref, mem1_ref, spk1_ref, b1_ref,
                      mem2_ref, spk2_ref, b2_ref, memo_ref,
                      w11_ref, b11_ref, wtm1_ref, btm1_ref, wta1_ref, bta1_ref,
                      w21_ref, b21_ref, wtm2_ref, btm2_ref, wta2_ref, bta2_ref,
                      w3_ref, b3_ref, wm3_ref, bm3_ref,
                      mem1_o, spk1_o, b1_o, mem2_o, spk2_o, b2_o, memo_o):

    def cell(x, mem, spk, bb, w1, b1, wtm, btm, wta, bta):
        d = _mm(x, w1) + b1
        tau_m = jax.nn.sigmoid(_mm(jnp.concatenate([d, mem], axis=-1), wtm) + btm)
        tau_a = jax.nn.sigmoid(_mm(jnp.concatenate([d, bb], axis=-1), wta) + bta)
        return _mem_update_adp(d, mem, spk, tau_a, tau_m, bb)

    m1, s1, bb1 = cell(x_ref[...], mem1_ref[...], spk1_ref[...], b1_ref[...],
                       w11_ref[...], b11_ref[...], wtm1_ref[...], btm1_ref[...],
                       wta1_ref[...], bta1_ref[...])
    m2, s2, bb2 = cell(s1, mem2_ref[...], spk2_ref[...], b2_ref[...],
                       w21_ref[...], b21_ref[...], wtm2_ref[...], btm2_ref[...],
                       wta2_ref[...], bta2_ref[...])

    # layer3_x + layer3_tauM + sigmoid_beta(alpha=1) + output_Neuron (leaky integrator)
    memo = memo_ref[...]
    d3 = _mm(s2, w3_ref[...]) + b3_ref[...]
    tau_m3 = jax.nn.sigmoid(_mm(jnp.concatenate([d3, memo], axis=-1), wm3_ref[...])
                            + bm3_ref[...])
    memo_new = memo + (d3 - memo) * tau_m3

    # all state reads above; writes last (inputs 1..7 alias outputs 0..6)
    mem1_o[...] = m1
    spk1_o[...] = s1
    b1_o[...] = bb1
    mem2_o[...] = m2
    spk2_o[...] = s2
    b2_o[...] = bb2
    memo_o[...] = memo_new


# ---------------------------------------------------------------------------
# Wrappers: single whole-array VMEM blocks, grid=() (shapes are tiny)
# ---------------------------------------------------------------------------
def nchw_to_nhwc(x):
    return jnp.transpose(x, (0, 2, 3, 1))


def nhwc_to_nchw(x):
    return jnp.transpose(x, (0, 3, 1, 2))


def _flat_nhwc(x_nchw):
    N, C, H, W = x_nchw.shape
    return nchw_to_nhwc(x_nchw.astype(jnp.float32)).reshape(N * H * W, C)


def _unflat_to_nchw(x2d, N, H, W, C):
    return nhwc_to_nchw(x2d.reshape(N, H, W, C))


def conv_cell_forward(p, x2d, mem2d, spk2d, b2d, N, H, W):
    Cin = x2d.shape[-1]
    Cout = p['wx'].shape[-1]
    Ho, Wo = H // 2, W // 2              # nn.MaxPool2d(2,2) floor semantics
    R_out = N * Ho * Wo

    # tap-major weight layout for the single-matmul 3x3 conv
    wx9 = p['wx'].reshape(9 * Cin, Cout)
    wm9 = p['wm'].reshape(9 * Cout, Cout)
    wa9 = p['wa'].reshape(9 * Cout, Cout)

    kern = functools.partial(conv_cell_kernel, N=N, H=H, W=W, Ho=Ho, Wo=Wo)
    args = (x2d, mem2d, spk2d, b2d,
            wx9, p['bx'], p['g1'], p['be1'],
            wm9, p['bm'], p['g2'], p['be2'],
            wa9, p['ba'], p['g3'], p['be3'])
    out_shape = (jax.ShapeDtypeStruct((R_out, Cout), jnp.float32),) * 3
    return pl.pallas_call(
        kern,
        out_shape=out_shape,
        in_specs=[_vspec() for _ in args],
        out_specs=(_vspec(),) * 3,
        input_output_aliases={1: 0, 2: 1, 3: 2},    # mem/spk/b updated in place
    )(*args)


def dense_tail_forward(params, f_spike, h9, h10, h11, h12, h13, h14, h15):
    p1, p2, p3 = params['snn1'], params['snn2'], params['out']
    Bn = f_spike.shape[0]
    Hd = p1['w1'].shape[-1]
    O = p3['w3'].shape[-1]
    args = (f_spike, h9, h10, h11, h12, h13, h14, h15,
            p1['w1'], p1['b1'], p1['wtm'], p1['btm'], p1['wta'], p1['bta'],
            p2['w1'], p2['b1'], p2['wtm'], p2['btm'], p2['wta'], p2['bta'],
            p3['w3'], p3['b3'], p3['wm3'], p3['bm3'])
    out_shape = (jax.ShapeDtypeStruct((Bn, Hd), jnp.float32),) * 6 \
        + (jax.ShapeDtypeStruct((Bn, O), jnp.float32),)
    return pl.pallas_call(
        dense_tail_kernel,
        out_shape=out_shape,
        in_specs=[_vspec() for _ in args],
        out_specs=(_vspec(),) * 7,
        input_output_aliases={1: 0, 2: 1, 3: 2, 4: 3, 5: 4, 6: 5, 7: 6},
    )(*args)


def snn_forward(params, inputs, h, c_in, h_in, w_in):
    b = inputs.shape[0]
    x = inputs.reshape(b, c_in, h_in, w_in)            # mirrors inputs.view(b, C, H, W)
    x2d = _flat_nhwc(x)

    # conv path: three fused cells; the spike map stays in kernel-native NHWC-flat layout
    # between cells; NCHW conversion only for the returned (module-layout) state.
    H, W = h_in, w_in
    spk_in = x2d
    conv_outs = []
    for li, name in enumerate(('conv1', 'conv2', 'conv3')):
        mem2d = _flat_nhwc(h[3 * li + 0])
        spk2d = _flat_nhwc(h[3 * li + 1])
        b2d = _flat_nhwc(h[3 * li + 2])
        m, s, bb = conv_cell_forward(params[name], spk_in, mem2d, spk2d, b2d, b, H, W)
        H, W = H // 2, W // 2
        conv_outs.append((m, s, bb, H, W, params[name]['wx'].shape[-1]))
        spk_in = s

    nchw_states = []
    for (m, s, bb, Hc, Wc, Cc) in conv_outs:
        nchw_states += [_unflat_to_nchw(m, b, Hc, Wc, Cc),
                        _unflat_to_nchw(s, b, Hc, Wc, Cc),
                        _unflat_to_nchw(bb, b, Hc, Wc, Cc)]

    spk_c3_nchw = nchw_states[7]
    f_spike = spk_c3_nchw.reshape(b, -1)               # torch.flatten(spk_conv3, 1) (NCHW)

    mem_1, spk_1, b_1, mem_2, spk_2, b_2, mem_o = dense_tail_forward(
        params, f_spike, h[9], h[10], h[11], h[12], h[13], h[14], h[15])

    out = mem_o
    new_h = tuple(nchw_states) + (mem_1, spk_1, b_1, mem_2, spk_2, b_2, mem_o, out)
    return out, new_h, [new_h]


# ---------------------------------------------------------------------------
# Deterministic parameter initialization (shapes from the module's __init__)
# ---------------------------------------------------------------------------
def xavier_uniform(key, shape, fan_in, fan_out):
    limit = math.sqrt(6.0 / (fan_in + fan_out))
    return jax.random.uniform(key, shape, jnp.float32, -limit, limit)


def init_conv_cell(key, cin, cout):
    k1, k2, k3 = jax.random.split(key, 3)

    def conv_w(k, ci):
        return xavier_uniform(k, (3, 3, ci, cout), ci * 9, cout * 9)   # HWIO

    z = jnp.zeros((1, cout), jnp.float32)
    o = jnp.ones((1, cout), jnp.float32)
    return dict(wx=conv_w(k1, cin), bx=z, g1=o, be1=z,
                wm=conv_w(k2, cout), bm=z, g2=o, be2=z,
                wa=conv_w(k3, cout), ba=z, g3=o, be3=z)


def init_dense_cell(key, nin, nh):
    k1, k2, k3 = jax.random.split(key, 3)
    z = jnp.zeros((1, nh), jnp.float32)
    return dict(w1=xavier_uniform(k1, (nin, nh), nin, nh), b1=z,
                wtm=xavier_uniform(k2, (2 * nh, nh), 2 * nh, nh), btm=z,   # cat(dense, mem)
                wta=xavier_uniform(k3, (2 * nh, nh), 2 * nh, nh), bta=z)   # cat(dense, b)


def init_readout(key, nh, no):
    k1, k2 = jax.random.split(key, 2)
    z = jnp.zeros((1, no), jnp.float32)
    return dict(w3=xavier_uniform(k1, (nh, no), nh, no), b3=z,
                wm3=xavier_uniform(k2, (2 * no, no), 2 * no, no), bm3=z)   # cat(dense3, mem_o)


# ---------------------------------------------------------------------------
# Pure-JAX reference (lax.conv / reduce_window) for the correctness check
# ---------------------------------------------------------------------------
def ref_forward(params, inputs, h, cfg):
    c_in, h_in, w_in = cfg
    b = inputs.shape[0]
    x = nchw_to_nhwc(inputs.reshape(b, c_in, h_in, w_in)).astype(jnp.float32)

    def conv3x3(xn, w, bias):
        co = w.shape[-1]
        y = lax.conv_general_dilated(xn, w, (1, 1), ((1, 1), (1, 1)),
                                     dimension_numbers=('NHWC', 'HWIO', 'NHWC'),
                                     precision=HP)
        return y + bias.reshape(1, 1, 1, co)

    def bn(xn, g, be):
        mean = jnp.mean(xn, axis=(0, 1, 2), keepdims=True)
        var = jnp.mean((xn - mean) ** 2, axis=(0, 1, 2), keepdims=True)
        return (xn - mean) * lax.rsqrt(var + BN_EPS) * g.reshape(1, 1, 1, -1) \
            + be.reshape(1, 1, 1, -1)

    def pool(xn):
        return lax.reduce_window(xn, -jnp.inf, lax.max,
                                 (1, 2, 2, 1), (1, 2, 2, 1), 'VALID')

    def upd(inp, mem, spk, ta, tm, bb):
        bb = ta * bb + (1.0 - ta) * spk
        Bth = B_J0 + BETA_ADAPT * bb
        mem = mem + (inp - mem) * tm
        s = (mem - Bth > 0).astype(jnp.float32)
        return (1.0 - s) * mem, s, bb

    def conv_cell(p, xn, mem, spk, bb):
        mem, spk, bb = nchw_to_nhwc(mem), nchw_to_nhwc(spk), nchw_to_nhwc(bb)
        cx = pool(bn(conv3x3(xn, p['wx'], p['bx']), p['g1'], p['be1']))
        tm = jax.nn.sigmoid(bn(conv3x3(cx + mem, p['wm'], p['bm']), p['g2'], p['be2']))
        ta = jax.nn.sigmoid(bn(conv3x3(cx + bb, p['wa'], p['ba']), p['g3'], p['be3']))
        m1, s1, b1 = upd(cx, mem, spk, ta, tm, bb)
        return nhwc_to_nchw(m1), nhwc_to_nchw(s1), nhwc_to_nchw(b1)

    def dense_cell(p, xt, mem, spk, bb):
        d = jnp.dot(xt, p['w1'], precision=HP) + p['b1']
        tm = jax.nn.sigmoid(jnp.dot(jnp.concatenate([d, mem], axis=-1), p['wtm'],
                                    precision=HP) + p['btm'])
        ta = jax.nn.sigmoid(jnp.dot(jnp.concatenate([d, bb], axis=-1), p['wta'],
                                    precision=HP) + p['bta'])
        return upd(d, mem, spk, ta, tm, bb)

    _, s1, _ = conv_cell(params['conv1'], x, h[0], h[1], h[2])
    _, s2, _ = conv_cell(params['conv2'], nchw_to_nhwc(s1), h[3], h[4], h[5])
    _, s3, _ = conv_cell(params['conv3'], nchw_to_nhwc(s2), h[6], h[7], h[8])
    f = s3.reshape(b, -1)
    _, sd1, _ = dense_cell(params['snn1'], f, h[9], h[10], h[11])
    _, sd2, _ = dense_cell(params['snn2'], sd1, h[12], h[13], h[14])
    p = params['out']
    d3 = jnp.dot(sd2, p['w3'], precision=HP) + p['b3']
    tm2 = jax.nn.sigmoid(jnp.dot(jnp.concatenate([d3, h[15]], axis=-1), p['wm3'],
                                 precision=HP) + p['bm3'])
    return h[15] + (d3 - h[15]) * tm2


# ---------------------------------------------------------------------------
if __name__ == "__main__":
    B = 2
    C_IN, H_IN, W_IN = 4, 16, 16            # scaled-down analog of [19, 23, 125]
    C1, C2, C3 = 8, 8, 16                   # analog of 16 / 32 / 64
    HIDDEN, OUT = 32, 10

    key = jax.random.PRNGKey(0)
    k_par, k_in, k_h = jax.random.split(key, 3)
    kc1, kc2, kc3, ks1, ks2, kro = jax.random.split(k_par, 6)

    feat = C3 * (H_IN // 8) * (W_IN // 8)
    params = dict(
        conv1=init_conv_cell(kc1, C_IN, C1),
        conv2=init_conv_cell(kc2, C1, C2),
        conv3=init_conv_cell(kc3, C2, C3),
        snn1=init_dense_cell(ks1, feat, HIDDEN),
        snn2=init_dense_cell(ks2, HIDDEN, HIDDEN),
        out=init_readout(kro, HIDDEN, OUT),
    )

    def init_state(k, shape):
        km, ks, kb = jax.random.split(k, 3)
        mem = 0.1 * jax.random.normal(km, shape, jnp.float32)
        spk = (jax.random.uniform(ks, shape) > 0.7).astype(jnp.float32)
        bad = B_J0 + 0.05 * jax.random.normal(kb, shape, jnp.float32)
        return mem, spk, bad

    kh = jax.random.split(k_h, 6)
    h = []
    h += list(init_state(kh[0], (B, C1, H_IN // 2, W_IN // 2)))
    h += list(init_state(kh[1], (B, C2, H_IN // 4, W_IN // 4)))
    h += list(init_state(kh[2], (B, C3, H_IN // 8, W_IN // 8)))
    h += list(init_state(kh[3], (B, HIDDEN)))
    h += list(init_state(kh[4], (B, HIDDEN)))
    mem_o0 = 0.1 * jax.random.normal(kh[5], (B, OUT), jnp.float32)
    h += [mem_o0, jnp.zeros((B, OUT), jnp.float32)]
    h = tuple(h)

    inputs = jax.random.normal(k_in, (B, C_IN, H_IN * W_IN), jnp.float32)

    # resolve the roll sign convention before tracing the main kernels
    _roll_is_numpy_convention()

    fwd = jax.jit(lambda p, xx, hh: snn_forward(p, xx, hh, C_IN, H_IN, W_IN))
    out, final_state, hiddens = fwd(params, inputs, h)
    out = jax.block_until_ready(out)

    ref = ref_forward(params, inputs, h, (C_IN, H_IN, W_IN))
    err = float(jnp.max(jnp.abs(out - ref)))
    if not bool(jnp.all(jnp.isfinite(out))) or err > 1e-3:
        raise RuntimeError(f"Pallas output mismatch vs JAX reference: max|diff|={err}")

    print("KERNEL_OK")
</pallas_src>

<mosaic_0001>
module attributes {stable_mosaic.version = 11 : i64} {
  func.func @k(%arg0: memref<16x128xf32, #tpu.memory_space<vmem>>, %arg1: memref<16x128xf32, #tpu.memory_space<vmem>>) attributes {dimension_semantics = [], scalar_prefetch = 0 : i64, scratch_operands = 0 : i64, tpu.core_type = #tpu.core_type<tc>} {
    %c0 = arith.constant 0 : index
    %c0_0 = arith.constant 0 : index
    %0 = vector.load %arg0[%c0, %c0_0] : memref<16x128xf32, #tpu.memory_space<vmem>>, vector<16x128xf32>
    %c1_i32 = arith.constant 1 : i32
    %1 = tpu.dynamic_rotate %0 by %c1_i32 dim 0 : vector<16x128xf32>, i32 -> vector<16x128xf32>
    %c0_1 = arith.constant 0 : index
    %c0_2 = arith.constant 0 : index
    %2 = vector.load %arg1[%c0_1, %c0_2] : memref<16x128xf32, #tpu.memory_space<vmem>>, vector<16x128xf32>
    tpu.vector_store %arg1[%c0_1, %c0_2], %1 {strides = array<i32>} : memref<16x128xf32, #tpu.memory_space<vmem>>, vector<16x128xf32>,
    return
  }
}

</mosaic_0001>

<llo_original>
// kernel: tpu_custom_call.1
$region0: #{tpu_custom_call.1}
  #allocation0 [shape = 'u32[]', space=smem, size = 0x4, offset = 0x4, fixed_abs, tag = 'smem constant byte address 0x4 - core index']
  #allocation1 [shape = 'u32[144,128]{1,0:T(1,128)}', space=vmem, size = 0x12000, scoped, tag = 'internal scratch']
  %s0 = inlined_call_operand.hbm [shape: f32[16,128], index: 0, kind: input, shape index: {}]
  %s1 = inlined_call_operand.hbm [shape: f32[16,128], index: 1, kind: output, shape index: {}]
  %s2 = sld [smem:[#allocation0]]
  $region18: #{tpu_custom_call.1} parent=0
    _
  %s4 = ssub.s32 1, %s2
  %s5 = scalar_select 0, %s4, %s2
  $region1: #{tpu_custom_call.1} parent=0
    #allocation2 [shape = 'u8[8192]{0}', space=vmem, size = 0x2000, scoped, tag = 'input window, operand 0, single buffered']
    #allocation3 [shape = 's32[1]{0}', space=sflag, size = 0x4, scoped, tag = 'scoped memory for tpu_custom_call.1']
    #allocation4 [shape = 's32[1]{0}', space=sflag, size = 0x4, scoped, tag = 'scoped memory for tpu_custom_call.1']
    #allocation5 [shape = 'u8[8192]{0}', space=vmem, size = 0x2000, scoped, tag = 'output window, operand 0, single buffered']
    %6 = vsyncpa [#allocation3], 0
    %7 = vsyncpa [#allocation4], 0
    // Predicated region
    $region2: #{tpu_custom_call.1} parent=1 // pred_check
      _
    $region3: #{tpu_custom_call.1} parent=1 // pred_check_branch
      %9 = sbr.rel (0) target = $region5
    $region4: #{tpu_custom_call.1} parent=1 // pred_region
      %s11 = ssub.s32 256, 256
      %12 = vsyncadd [#allocation3], %s11
      %s13 = sshll.u32 [#allocation2], 4
      %s14 = int_to_ptr.vmem [resolvable:$true] %s13
      %19 = dma.hbm_to_vmem [thread:$0]  %s0, 256, %s14, [#allocation3], 128, 128, 8
    $region5: #{tpu_custom_call.1} parent=1 // pred_fallthru
      _
    // Predicated region
    $region6: #{tpu_custom_call.1} parent=1 // pred_check
      _
    $region7: #{tpu_custom_call.1} parent=1 // pred_check_branch
      %21 = sbr.rel (0) target = $region9
    $region8: #{tpu_custom_call.1} parent=1 // pred_region
      %22 = dma.done [#allocation3], 256
    $region9: #{tpu_custom_call.1} parent=1 // pred_fallthru
      _
    %v23 = vld [vmem:[#allocation2] sm:$0xff]
    %v24 = vld [vmem:[#allocation2 + $0x8] sm:$0xff]
    %v25 = vrot.slane %v23, 7
    %v26 = vrot.slane %v24, 7
    %v27 = vlaneseq
    %v28 = vshrl.u32 %v27, 7
    %vm29 = vcmp.lt.s32.totalorder %v28, 1
    %v30 = vsel %vm29, %v25, %v26
    %v31 = vsel %vm29, %v26, %v25
    %32 = vst [vmem:[#allocation5] sm:$0xff] %v31
    %33 = vst [vmem:[#allocation5 + $0x8] sm:$0xff] %v30
    // Predicated region
    $region10: #{tpu_custom_call.1} parent=1 // pred_check
      _
    $region11: #{tpu_custom_call.1} parent=1 // pred_check_branch
      %35 = sbr.rel (0) target = $region13
    $region12: #{tpu_custom_call.1} parent=1 // pred_region
      %s37 = ssub.s32 256, 256
      %38 = vsyncadd [#allocation4], %s37
      %s39 = sshll.u32 [#allocation5], 4
      %s40 = int_to_ptr.vmem [resolvable:$true] %s39
      %45 = dma.vmem_to_hbm [thread:$0]  %s40, 256, %s1, [#allocation4], 128, 128, 8
    $region13: #{tpu_custom_call.1} parent=1 // pred_fallthru
      _
    // Predicated region
    $region14: #{tpu_custom_call.1} parent=1 // pred_check
      _
    $region15: #{tpu_custom_call.1} parent=1 // pred_check_branch
      %47 = sbr.rel (0) target = $region17
    $region16: #{tpu_custom_call.1} parent=1 // pred_region
      %48 = dma.done [#allocation4], 256
    $region17: #{tpu_custom_call.1} parent=1 // pred_fallthru
      _
    %49 = vsyncpa [#allocation3], 1
    %50 = vsyncpa [#allocation4], 1

</llo_original>
